<compile_context>
chip_gen: v5e
topology: v5e:2x2
jax: 0.10.0
libtpu: 0.0.40
codegen_flags: <defaults>
</compile_context>

<pallas_src>
import jax
import jax.numpy as jnp
from jax.experimental import pallas as pl
from jax.experimental.pallas import tpu as pltpu


def _round_up(x, m):
    return ((x + m - 1) // m) * m


def rcnn_head_kernel(x_ref, w1_ref, b1_ref, w2_ref, b2_ref, wh_ref, bh_ref,
                     out_ref):
    x = x_ref[...]                                     # (tile_m, in) bf16

    # fc1 + ReLU  (bf16 MXU, f32 accumulate)
    h1 = jnp.dot(x, w1_ref[...], preferred_element_type=jnp.float32)
    h1 = jnp.maximum(h1 + b1_ref[...], 0.0).astype(jnp.bfloat16)

    # fc2 + ReLU
    h2 = jnp.dot(h1, w2_ref[...], preferred_element_type=jnp.float32)
    h2 = jnp.maximum(h2 + b2_ref[...], 0.0).astype(jnp.bfloat16)

    # fused logit+delta head: one matmul, one store
    out = jnp.dot(h2, wh_ref[...], preferred_element_type=jnp.float32)
    out_ref[...] = (out + bh_ref[...]).astype(out_ref.dtype)


def rcnn_head_forward(crops, params, *, tile_m=256):
    """crops: (N, C, D, H, W) float32. Returns (logits, deltas) in float32."""
    n = crops.shape[0]
    x = crops.reshape(n, -1).astype(jnp.bfloat16)      # same as torch .view(N,-1)
    in_features = x.shape[1]

    # bf16 weights (halve HBM weight traffic); biases stay f32 (added to f32 acc).
    w1 = params["w1"].astype(jnp.bfloat16)
    w2 = params["w2"].astype(jnp.bfloat16)
    wh = jnp.concatenate([params["wl"], params["wd"]], axis=1).astype(jnp.bfloat16)
    b1 = params["b1"]
    b2 = params["b2"]
    bh = jnp.concatenate([params["bl"], params["bd"]], axis=1)

    num_class = params["wl"].shape[1]
    head_out = wh.shape[1]                             # num_class * 7
    hid1 = w1.shape[1]                                 # 512
    hid2 = w2.shape[1]                                 # 256

    # Tile the ROI axis; small batches get a single small (sublane-aligned) tile.
    tile = min(tile_m, _round_up(n, 8))
    padded_n = _round_up(n, tile)
    if padded_n != n:
        x = jnp.pad(x, ((0, padded_n - n), (0, 0)))
    grid = (padded_n // tile,)

    # Weight/bias blocks are constant across the grid -> stay VMEM-resident.
    const = lambda i: (0, 0)
    row = lambda i: (i, 0)
    in_specs = [
        pl.BlockSpec((tile, in_features), row),        # x (tiled over ROIs)
        pl.BlockSpec((in_features, hid1), const),      # w1
        pl.BlockSpec((1, hid1), const),                # b1
        pl.BlockSpec((hid1, hid2), const),             # w2
        pl.BlockSpec((1, hid2), const),                # b2
        pl.BlockSpec((hid2, head_out), const),         # fused head weight
        pl.BlockSpec((1, head_out), const),            # fused head bias
    ]
    out_spec = pl.BlockSpec((tile, head_out), row)

    out = pl.pallas_call(
        rcnn_head_kernel,
        out_shape=jax.ShapeDtypeStruct((padded_n, head_out), jnp.float32),
        grid=grid,
        in_specs=in_specs,
        out_specs=out_spec,
        compiler_params=pltpu.CompilerParams(
            dimension_semantics=("parallel",)),        # v7x: shard ROIs over 2 TCs
    )(x, w1, b1, w2, b2, wh, bh)

    out = out[:n]
    logits = out[:, :num_class]
    deltas = out[:, num_class:]
    return logits, deltas


def init_params(key, in_features, num_class):
    """Deterministic synthetic parameter init (shapes match the torch module)."""
    ks = jax.random.split(key, 8)

    def lin(kw, kb, fan_in, fan_out):
        scale = 1.0 / jnp.sqrt(jnp.float32(fan_in))
        w = jax.random.uniform(kw, (fan_in, fan_out), jnp.float32, -scale, scale)
        b = jax.random.uniform(kb, (1, fan_out), jnp.float32, -scale, scale)
        return w, b

    w1, b1 = lin(ks[0], ks[1], in_features, 512)
    w2, b2 = lin(ks[2], ks[3], 512, 256)
    wl, bl = lin(ks[4], ks[5], 256, num_class)
    wd, bd = lin(ks[6], ks[7], 256, num_class * 6)
    return {"w1": w1, "b1": b1, "w2": w2, "b2": b2,
            "wl": wl, "bl": bl, "wd": wd, "bd": bd}


def rcnn_head_reference_bf16(crops, params):
    """Plain-JAX reference matching the kernel's bf16-input / f32-accumulate math."""
    x = crops.reshape(crops.shape[0], -1).astype(jnp.bfloat16)
    w1 = params["w1"].astype(jnp.bfloat16)
    w2 = params["w2"].astype(jnp.bfloat16)
    wl = params["wl"].astype(jnp.bfloat16)
    wd = params["wd"].astype(jnp.bfloat16)
    h1 = jax.nn.relu(
        jnp.dot(x, w1, preferred_element_type=jnp.float32) + params["b1"]
    ).astype(jnp.bfloat16)
    h2 = jax.nn.relu(
        jnp.dot(h1, w2, preferred_element_type=jnp.float32) + params["b2"]
    ).astype(jnp.bfloat16)
    logits = jnp.dot(h2, wl, preferred_element_type=jnp.float32) + params["bl"]
    deltas = jnp.dot(h2, wd, preferred_element_type=jnp.float32) + params["bd"]
    return logits, deltas


def rcnn_head_reference_f32(crops, params):
    """Full-precision reference (loose tolerance vs bf16 kernel)."""
    x = crops.reshape(crops.shape[0], -1)
    h1 = jax.nn.relu(x @ params["w1"] + params["b1"])
    h2 = jax.nn.relu(h1 @ params["w2"] + params["b2"])
    return h2 @ params["wl"] + params["bl"], h2 @ params["wd"] + params["bd"]


if __name__ == "__main__":
    # cfg = {'num_class': 2, 'rcnn_crop_size': (2, 2, 2)}, in_channels=16
    num_class = 2
    crop_size = (2, 2, 2)
    in_channels = 16
    batch = 8

    in_features = in_channels * crop_size[0] * crop_size[1] * crop_size[2]  # 128

    key = jax.random.PRNGKey(0)
    k_crops, k_params = jax.random.split(key)

    crops = jax.random.normal(
        k_crops, (batch, in_channels) + crop_size, dtype=jnp.float32)
    params = init_params(k_params, in_features, num_class)

    logits, deltas = rcnn_head_forward(crops, params)
    logits, deltas = jax.block_until_ready((logits, deltas))

    assert logits.shape == (batch, num_class)
    assert deltas.shape == (batch, num_class * 6)

    # Tight check against a bf16-matched reference.
    ref_logits, ref_deltas = rcnn_head_reference_bf16(crops, params)
    assert jnp.allclose(logits, ref_logits, atol=2e-3, rtol=2e-3)
    assert jnp.allclose(deltas, ref_deltas, atol=2e-3, rtol=2e-3)

    # Loose sanity check against the full-f32 PyTorch-equivalent math.
    f32_logits, f32_deltas = rcnn_head_reference_f32(crops, params)
    assert jnp.allclose(logits, f32_logits, atol=5e-2, rtol=5e-2)
    assert jnp.allclose(deltas, f32_deltas, atol=5e-2, rtol=5e-2)

    print("KERNEL_OK")
</pallas_src>

<mosaic_0001>
module attributes {stable_mosaic.version = 11 : i64} {
  func.func @rcnn_head_kernel(%arg0: i32, %arg1: memref<8x128xbf16, #tpu.memory_space<vmem>>, %arg2: memref<128x512xbf16, #tpu.memory_space<vmem>>, %arg3: memref<1x512xf32, #tpu.memory_space<vmem>>, %arg4: memref<512x256xbf16, #tpu.memory_space<vmem>>, %arg5: memref<1x256xf32, #tpu.memory_space<vmem>>, %arg6: memref<256x14xbf16, #tpu.memory_space<vmem>>, %arg7: memref<1x14xf32, #tpu.memory_space<vmem>>, %arg8: memref<8x14xf32, #tpu.memory_space<vmem>>) attributes {dimension_semantics = [#tpu.dimension_semantics<parallel>], iteration_bounds = array<i64: 1>, scalar_prefetch = 0 : i64, scratch_operands = 0 : i64, tpu.core_type = #tpu.core_type<tc>, window_params = [{transform_indices = @transform_0, window_bounds = array<i64: 8, 128>}, {pipeline_mode = #tpu.pipeline_mode<synchronous>, transform_indices = @transform_1, window_bounds = array<i64: 128, 512>}, {pipeline_mode = #tpu.pipeline_mode<synchronous>, transform_indices = @transform_2, window_bounds = array<i64: 1, 512>}, {pipeline_mode = #tpu.pipeline_mode<synchronous>, transform_indices = @transform_3, window_bounds = array<i64: 512, 256>}, {pipeline_mode = #tpu.pipeline_mode<synchronous>, transform_indices = @transform_4, window_bounds = array<i64: 1, 256>}, {pipeline_mode = #tpu.pipeline_mode<synchronous>, transform_indices = @transform_5, window_bounds = array<i64: 256, 14>}, {pipeline_mode = #tpu.pipeline_mode<synchronous>, transform_indices = @transform_6, window_bounds = array<i64: 1, 14>}, {transform_indices = @transform_7, window_bounds = array<i64: 8, 14>}]} {
    %c0 = arith.constant 0 : index
    %c0_0 = arith.constant 0 : index
    %0 = vector.load %arg1[%c0, %c0_0] : memref<8x128xbf16, #tpu.memory_space<vmem>>, vector<8x128xbf16>
    %c0_1 = arith.constant 0 : index
    %c0_2 = arith.constant 0 : index
    %1 = vector.load %arg2[%c0_1, %c0_2] : memref<128x512xbf16, #tpu.memory_space<vmem>>, vector<128x512xbf16>
    %cst = arith.constant dense<0.000000e+00> : vector<8x512xf32>
    %2 = tpu.matmul %0, %1, %cst {dimension_numbers = #tpu.dot_dimension_numbers<[1], [0], [0], [1], [0, 0, 1, 1], [], []>} : vector<8x128xbf16>, vector<128x512xbf16>, vector<8x512xf32> -> vector<8x512xf32>
    %c0_3 = arith.constant 0 : index
    %c0_4 = arith.constant 0 : index
    %3 = vector.load %arg3[%c0_3, %c0_4] : memref<1x512xf32, #tpu.memory_space<vmem>>, vector<1x512xf32>
    %4 = vector.broadcast %3 : vector<1x512xf32> to vector<8x512xf32>
    %5 = arith.addf %2, %4 : vector<8x512xf32>
    %cst_5 = arith.constant 0.000000e+00 : f32
    %6 = vector.broadcast %cst_5 : f32 to vector<8x512xf32>
    %7 = arith.maximumf %5, %6 : vector<8x512xf32>
    %8 = arith.truncf %7 : vector<8x512xf32> to vector<8x512xbf16>
    %c0_6 = arith.constant 0 : index
    %c0_7 = arith.constant 0 : index
    %9 = vector.load %arg4[%c0_6, %c0_7] : memref<512x256xbf16, #tpu.memory_space<vmem>>, vector<512x256xbf16>
    %cst_8 = arith.constant dense<0.000000e+00> : vector<8x256xf32>
    %10 = tpu.matmul %8, %9, %cst_8 {dimension_numbers = #tpu.dot_dimension_numbers<[1], [0], [0], [1], [0, 0, 1, 1], [], []>} : vector<8x512xbf16>, vector<512x256xbf16>, vector<8x256xf32> -> vector<8x256xf32>
    %c0_9 = arith.constant 0 : index
    %c0_10 = arith.constant 0 : index
    %11 = vector.load %arg5[%c0_9, %c0_10] : memref<1x256xf32, #tpu.memory_space<vmem>>, vector<1x256xf32>
    %12 = vector.broadcast %11 : vector<1x256xf32> to vector<8x256xf32>
    %13 = arith.addf %10, %12 : vector<8x256xf32>
    %cst_11 = arith.constant 0.000000e+00 : f32
    %14 = vector.broadcast %cst_11 : f32 to vector<8x256xf32>
    %15 = arith.maximumf %13, %14 : vector<8x256xf32>
    %16 = arith.truncf %15 : vector<8x256xf32> to vector<8x256xbf16>
    %c0_12 = arith.constant 0 : index
    %c0_13 = arith.constant 0 : index
    %17 = vector.load %arg6[%c0_12, %c0_13] : memref<256x14xbf16, #tpu.memory_space<vmem>>, vector<256x14xbf16>
    %cst_14 = arith.constant dense<0.000000e+00> : vector<8x14xf32>
    %18 = tpu.matmul %16, %17, %cst_14 {dimension_numbers = #tpu.dot_dimension_numbers<[1], [0], [0], [1], [0, 0, 1, 1], [], []>} : vector<8x256xbf16>, vector<256x14xbf16>, vector<8x14xf32> -> vector<8x14xf32>
    %c0_15 = arith.constant 0 : index
    %c0_16 = arith.constant 0 : index
    %19 = vector.load %arg7[%c0_15, %c0_16] : memref<1x14xf32, #tpu.memory_space<vmem>>, vector<1x14xf32>
    %20 = vector.broadcast %19 : vector<1x14xf32> to vector<8x14xf32>
    %21 = arith.addf %18, %20 : vector<8x14xf32>
    %c0_17 = arith.constant 0 : index
    %c0_18 = arith.constant 0 : index
    %22 = vector.load %arg8[%c0_17, %c0_18] : memref<8x14xf32, #tpu.memory_space<vmem>>, vector<8x14xf32>
    tpu.vector_store %arg8[%c0_17, %c0_18], %21 {strides = array<i32>} : memref<8x14xf32, #tpu.memory_space<vmem>>, vector<8x14xf32>,
    return
  }
  func.func @transform_0(%arg0: i32) -> (i32, i32) {
    %c0_i32 = arith.constant 0 : i32
    %c0_i32_0 = arith.constant 0 : i32
    return %arg0, %c0_i32 : i32, i32
  }
  func.func @transform_1(%arg0: i32) -> (i32, i32) {
    %c0_i32 = arith.constant 0 : i32
    %c0_i32_0 = arith.constant 0 : i32
    %c0_i32_1 = arith.constant 0 : i32
    return %c0_i32, %c0_i32_0 : i32, i32
  }
  func.func @transform_2(%arg0: i32) -> (i32, i32) {
    %c0_i32 = arith.constant 0 : i32
    %c0_i32_0 = arith.constant 0 : i32
    %c0_i32_1 = arith.constant 0 : i32
    return %c0_i32, %c0_i32_0 : i32, i32
  }
  func.func @transform_3(%arg0: i32) -> (i32, i32) {
    %c0_i32 = arith.constant 0 : i32
    %c0_i32_0 = arith.constant 0 : i32
    %c0_i32_1 = arith.constant 0 : i32
    return %c0_i32, %c0_i32_0 : i32, i32
  }
  func.func @transform_4(%arg0: i32) -> (i32, i32) {
    %c0_i32 = arith.constant 0 : i32
    %c0_i32_0 = arith.constant 0 : i32
    %c0_i32_1 = arith.constant 0 : i32
    return %c0_i32, %c0_i32_0 : i32, i32
  }
  func.func @transform_5(%arg0: i32) -> (i32, i32) {
    %c0_i32 = arith.constant 0 : i32
    %c0_i32_0 = arith.constant 0 : i32
    %c0_i32_1 = arith.constant 0 : i32
    return %c0_i32, %c0_i32_0 : i32, i32
  }
  func.func @transform_6(%arg0: i32) -> (i32, i32) {
    %c0_i32 = arith.constant 0 : i32
    %c0_i32_0 = arith.constant 0 : i32
    %c0_i32_1 = arith.constant 0 : i32
    return %c0_i32, %c0_i32_0 : i32, i32
  }
  func.func @transform_7(%arg0: i32) -> (i32, i32) {
    %c0_i32 = arith.constant 0 : i32
    %c0_i32_0 = arith.constant 0 : i32
    return %arg0, %c0_i32 : i32, i32
  }
}

</mosaic_0001>

<llo_original>
// kernel: tpu_custom_call.1
$region0: #{tpu_custom_call.1}
  #allocation0 [shape = 'u32[]', space=smem, size = 0x4, offset = 0x4, fixed_abs, tag = 'smem constant byte address 0x4 - core index']
  #allocation1 [shape = 'u32[72,128]{1,0:T(1,128)}', space=vmem, size = 0x9000, scoped, tag = 'internal scratch']
  %s0 = inlined_call_operand.vmem [shape: bf16[8,128], index: 0, kind: input, shape index: {}]
  %s1 = inlined_call_operand.hbm [shape: bf16[128,512], index: 1, kind: input, shape index: {}]
  %s2 = inlined_call_operand.vmem [shape: f32[1,512], index: 2, kind: input, shape index: {}]
  %s3 = inlined_call_operand.hbm [shape: bf16[512,256], index: 3, kind: input, shape index: {}]
  %s4 = inlined_call_operand.vmem [shape: f32[1,256], index: 4, kind: input, shape index: {}]
  %s5 = inlined_call_operand.vmem [shape: bf16[256,14], index: 5, kind: input, shape index: {}]
  %s6 = inlined_call_operand.vmem [shape: f32[1,14], index: 6, kind: input, shape index: {}]
  %s7 = inlined_call_operand.hbm [shape: f32[8,14], index: 7, kind: output, shape index: {}]
  %s8 = sld [smem:[#allocation0]]
  $region46: #{tpu_custom_call.1} parent=0
    _
  %s10 = ssub.s32 1, %s8
  %s11 = scalar_select 0, %s10, %s8
  $region1: #{tpu_custom_call.1} parent=0
    #allocation2 [shape = 'u8[131072]{0}', space=vmem, size = 0x20000, scoped, tag = 'input window, operand 1, single buffered']
    #allocation3 [shape = 's32[1]{0}', space=sflag, size = 0x4, scoped, tag = 'scoped memory for tpu_custom_call.1']
    #allocation4 [shape = 's32[1]{0}', space=sflag, size = 0x4, scoped, tag = 'scoped memory for tpu_custom_call.1']
    #allocation5 [shape = 'u8[262144]{0}', space=vmem, size = 0x40000, scoped, tag = 'input window, operand 3, single buffered']
    #allocation6 [shape = 's32[1]{0}', space=sflag, size = 0x4, scoped, tag = 'scoped memory for tpu_custom_call.1']
    #allocation7 [shape = 'u8[4096]{0}', space=vmem, size = 0x1000, scoped, tag = 'output window, operand 0, single buffered']
    %12 = vsyncpa [#allocation3], 0
    %13 = vsyncpa [#allocation6], 0
    %14 = vsyncpa [#allocation4], 0
    // Predicated region
    $region2: #{tpu_custom_call.1} parent=1 // pred_check
      _
    $region3: #{tpu_custom_call.1} parent=1 // pred_check_branch
      %16 = sbr.rel (0) target = $region5
    $region4: #{tpu_custom_call.1} parent=1 // pred_region
      _
    $region5: #{tpu_custom_call.1} parent=1 // pred_fallthru
      _
    // Predicated region
    $region6: #{tpu_custom_call.1} parent=1 // pred_check
      _
    $region7: #{tpu_custom_call.1} parent=1 // pred_check_branch
      %18 = sbr.rel (0) target = $region9
    $region8: #{tpu_custom_call.1} parent=1 // pred_region
      %20 = vsyncadd [#allocation3], 0
      %s21 = sshll.u32 %s1, 4
      %s22 = int_to_ptr.hbm [resolvable:$true] %s21
      %s23 = sshll.u32 [#allocation2], 4
      %s24 = int_to_ptr.vmem [resolvable:$true] %s23
      %29 = dma.hbm_to_vmem [thread:$0]  %s22, 4096, %s24, [#allocation3], 256, 256, 16
    $region9: #{tpu_custom_call.1} parent=1 // pred_fallthru
      _
    // Predicated region
    $region10: #{tpu_custom_call.1} parent=1 // pred_check
      _
    $region11: #{tpu_custom_call.1} parent=1 // pred_check_branch
      %31 = sbr.rel (0) target = $region13
    $region12: #{tpu_custom_call.1} parent=1 // pred_region
      _
    $region13: #{tpu_custom_call.1} parent=1 // pred_fallthru
      _
    // Predicated region
    $region14: #{tpu_custom_call.1} parent=1 // pred_check
      _
    $region15: #{tpu_custom_call.1} parent=1 // pred_check_branch
      %33 = sbr.rel (0) target = $region17
    $region16: #{tpu_custom_call.1} parent=1 // pred_region
      %35 = vsyncadd [#allocation6], 0
      %s36 = sshll.u32 %s3, 4
      %s37 = int_to_ptr.hbm [resolvable:$true] %s36
      %s38 = sshll.u32 [#allocation5], 4
      %s39 = int_to_ptr.vmem [resolvable:$true] %s38
      %44 = dma.hbm_to_vmem [thread:$0]  %s37, 8192, %s39, [#allocation6], 128, 128, 8
    $region17: #{tpu_custom_call.1} parent=1 // pred_fallthru
      _
    // Predicated region
    $region18: #{tpu_custom_call.1} parent=1 // pred_check
      _
    $region19: #{tpu_custom_call.1} parent=1 // pred_check_branch
      %46 = sbr.rel (0) target = $region21
    $region20: #{tpu_custom_call.1} parent=1 // pred_region
      _
    $region21: #{tpu_custom_call.1} parent=1 // pred_fallthru
      _
    // Predicated region
    $region22: #{tpu_custom_call.1} parent=1 // pred_check
      _
    $region23: #{tpu_custom_call.1} parent=1 // pred_check_branch
      %48 = sbr.rel (0) target = $region25
    $region24: #{tpu_custom_call.1} parent=1 // pred_region
      _
    $region25: #{tpu_custom_call.1} parent=1 // pred_fallthru
      _
    // Predicated region
    $region26: #{tpu_custom_call.1} parent=1 // pred_check
      _
    $region27: #{tpu_custom_call.1} parent=1 // pred_check_branch
      %50 = sbr.rel (0) target = $region29
    $region28: #{tpu_custom_call.1} parent=1 // pred_region
      _
    $region29: #{tpu_custom_call.1} parent=1 // pred_fallthru
      _
    // Predicated region
    $region30: #{tpu_custom_call.1} parent=1 // pred_check
      _
    $region31: #{tpu_custom_call.1} parent=1 // pred_check_branch
      %52 = sbr.rel (0) target = $region33
    $region32: #{tpu_custom_call.1} parent=1 // pred_region
      %54 = dma.done [#allocation3], 4096
    $region33: #{tpu_custom_call.1} parent=1 // pred_fallthru
      _
    // Predicated region
    $region34: #{tpu_custom_call.1} parent=1 // pred_check
      _
    $region35: #{tpu_custom_call.1} parent=1 // pred_check_branch
      %56 = sbr.rel (0) target = $region37
    $region36: #{tpu_custom_call.1} parent=1 // pred_region
      %58 = dma.done [#allocation6], 8192
    $region37: #{tpu_custom_call.1} parent=1 // pred_fallthru
      _
    %v59 = vld [vmem:[%s0] sm:$0xf]
    %v60 = vld [vmem:[#allocation2] sm:$0xff]
    %v61 = vld [vmem:[#allocation2 + $0x8] sm:$0xff]
    %v62 = vld [vmem:[#allocation2 + $0x10] sm:$0xff]
    %v63 = vld [vmem:[#allocation2 + $0x18] sm:$0xff]
    %v64 = vld [vmem:[#allocation2 + $0x20] sm:$0xff]
    %v65 = vld [vmem:[#allocation2 + $0x28] sm:$0xff]
    %v66 = vld [vmem:[#allocation2 + $0x30] sm:$0xff]
    %v67 = vld [vmem:[#allocation2 + $0x38] sm:$0xff]
    %v68 = vld [vmem:[#allocation2 + $0x40] sm:$0xff]
    %v69 = vld [vmem:[#allocation2 + $0x48] sm:$0xff]
    %v70 = vld [vmem:[#allocation2 + $0x50] sm:$0xff]
    %v71 = vld [vmem:[#allocation2 + $0x58] sm:$0xff]
    %v72 = vld [vmem:[#allocation2 + $0x60] sm:$0xff]
    %v73 = vld [vmem:[#allocation2 + $0x68] sm:$0xff]
    %v74 = vld [vmem:[#allocation2 + $0x70] sm:$0xff]
    %v75 = vld [vmem:[#allocation2 + $0x78] sm:$0xff]
    %v76 = vld [vmem:[#allocation2 + $0x80] sm:$0xff]
    %v77 = vld [vmem:[#allocation2 + $0x88] sm:$0xff]
    %v78 = vld [vmem:[#allocation2 + $0x90] sm:$0xff]
    %v79 = vld [vmem:[#allocation2 + $0x98] sm:$0xff]
    %v80 = vld [vmem:[#allocation2 + $0xa0] sm:$0xff]
    %v81 = vld [vmem:[#allocation2 + $0xa8] sm:$0xff]
    %v82 = vld [vmem:[#allocation2 + $0xb0] sm:$0xff]
    %v83 = vld [vmem:[#allocation2 + $0xb8] sm:$0xff]
    %v84 = vld [vmem:[#allocation2 + $0xc0] sm:$0xff]
    %v85 = vld [vmem:[#allocation2 + $0xc8] sm:$0xff]
    %v86 = vld [vmem:[#allocation2 + $0xd0] sm:$0xff]
    %v87 = vld [vmem:[#allocation2 + $0xd8] sm:$0xff]
    %v88 = vld [vmem:[#allocation2 + $0xe0] sm:$0xff]
    %v89 = vld [vmem:[#allocation2 + $0xe8] sm:$0xff]
    %v90 = vld [vmem:[#allocation2 + $0xf0] sm:$0xff]
    %v91 = vld [vmem:[#allocation2 + $0xf8] sm:$0xff]
    %v92 = vld [vmem:[%s2] sm:$0xf]
    %v94 = vperm.slane %v92, 0
    %v95 = vperm.slane %v92, 1
    %v96 = vperm.slane %v92, 2
    %v97 = vperm.slane %v92, 3
    %v134 = vunpack.c.l.b16 %v60
    %v135 = vunpack.c.h.b16 %v60
    %v136 = vunpack.c.l.b16 %v61
    %v137 = vunpack.c.h.b16 %v61
    %v138 = vunpack.c.l.b16 %v62
    %v139 = vunpack.c.h.b16 %v62
    %v140 = vunpack.c.l.b16 %v63
    %v141 = vunpack.c.h.b16 %v63
    %v142 = vunpack.c.l.b16 %v64
    %v143 = vunpack.c.h.b16 %v64
    %v144 = vunpack.c.l.b16 %v65
    %v145 = vunpack.c.h.b16 %v65
    %v146 = vunpack.c.l.b16 %v66
    %v147 = vunpack.c.h.b16 %v66
    %v148 = vunpack.c.l.b16 %v67
    %v149 = vunpack.c.h.b16 %v67
    %v150 = vunpack.c.l.b16 %v68
    %v151 = vunpack.c.h.b16 %v68
    %v152 = vunpack.c.l.b16 %v69
    %v153 = vunpack.c.h.b16 %v69
    %v154 = vunpack.c.l.b16 %v70
    %v155 = vunpack.c.h.b16 %v70
    %v156 = vunpack.c.l.b16 %v71
    %v157 = vunpack.c.h.b16 %v71
    %v158 = vunpack.c.l.b16 %v72
    %v159 = vunpack.c.h.b16 %v72
    %v160 = vunpack.c.l.b16 %v73
    %v161 = vunpack.c.h.b16 %v73
    %v162 = vunpack.c.l.b16 %v74
    %v163 = vunpack.c.h.b16 %v74
    %v164 = vunpack.c.l.b16 %v75
    %v165 = vunpack.c.h.b16 %v75
    %v166 = vunpack.c.l.b16 %v76
    %v167 = vunpack.c.h.b16 %v76
    %v168 = vunpack.c.l.b16 %v77
    %v169 = vunpack.c.h.b16 %v77
    %v170 = vunpack.c.l.b16 %v78
    %v171 = vunpack.c.h.b16 %v78
    %v172 = vunpack.c.l.b16 %v79
    %v173 = vunpack.c.h.b16 %v79
    %v174 = vunpack.c.l.b16 %v80
    %v175 = vunpack.c.h.b16 %v80
    %v176 = vunpack.c.l.b16 %v81
    %v177 = vunpack.c.h.b16 %v81
    %v178 = vunpack.c.l.b16 %v82
    %v179 = vunpack.c.h.b16 %v82
    %v180 = vunpack.c.l.b16 %v83
    %v181 = vunpack.c.h.b16 %v83
    %v182 = vunpack.c.l.b16 %v84
    %v183 = vunpack.c.h.b16 %v84
    %v184 = vunpack.c.l.b16 %v85
    %v185 = vunpack.c.h.b16 %v85
    %v186 = vunpack.c.l.b16 %v86
    %v187 = vunpack.c.h.b16 %v86
    %v188 = vunpack.c.l.b16 %v87
    %v189 = vunpack.c.h.b16 %v87
    %v190 = vunpack.c.l.b16 %v88
    %v191 = vunpack.c.h.b16 %v88
    %v192 = vunpack.c.l.b16 %v89
    %v193 = vunpack.c.h.b16 %v89
    %v194 = vunpack.c.l.b16 %v90
    %v195 = vunpack.c.h.b16 %v90
    %v196 = vunpack.c.l.b16 %v91
    %v197 = vunpack.c.h.b16 %v91
    %v198 = vpack.c.b16 %v138, %v134
    %v199 = vpack.c.b16 %v139, %v135
    %v200 = vpack.c.b16 %v140, %v136
    %v201 = vpack.c.b16 %v141, %v137
    %v202 = vpack.c.b16 %v146, %v142
    %v203 = vpack.c.b16 %v147, %v143
    %v204 = vpack.c.b16 %v148, %v144
    %v205 = vpack.c.b16 %v149, %v145
    %v206 = vpack.c.b16 %v154, %v150
    %v207 = vpack.c.b16 %v155, %v151
    %v208 = vpack.c.b16 %v156, %v152
    %v209 = vpack.c.b16 %v157, %v153
    %v210 = vpack.c.b16 %v162, %v158
    %v211 = vpack.c.b16 %v163, %v159
    %v212 = vpack.c.b16 %v164, %v160
    %v213 = vpack.c.b16 %v165, %v161
    %v214 = vpack.c.b16 %v170, %v166
    %v215 = vpack.c.b16 %v171, %v167
    %v216 = vpack.c.b16 %v172, %v168
    %v217 = vpack.c.b16 %v173, %v169
    %v218 = vpack.c.b16 %v178, %v174
    %v219 = vpack.c.b16 %v179, %v175
    %v220 = vpack.c.b16 %v180, %v176
    %v221 = vpack.c.b16 %v181, %v177
    %v222 = vpack.c.b16 %v186, %v182
    %v223 = vpack.c.b16 %v187, %v183
    %v224 = vpack.c.b16 %v188, %v184
    %v225 = vpack.c.b16 %v189, %v185
    %v226 = vpack.c.b16 %v194, %v190
    %v227 = vpack.c.b16 %v195, %v191
    %v228 = vpack.c.b16 %v196, %v192
    %v229 = vpack.c.b16 %v197, %v193
    %262 = vmatpush.bf16.msra.mxu0 %v226
    %263 = vmatpush.bf16.msra.mxu0 %v222
    %264 = vmatpush.bf16.msra.mxu0 %v218
    %265 = vmatpush.bf16.msra.mxu0 %v214
    %266 = vmatpush.bf16.msra.mxu0 %v210
    %267 = vmatpush.bf16.msra.mxu0 %v206
    %268 = vmatpush.bf16.msra.mxu0 %v202
    %269 = vmatpush.bf16.msra.mxu0 %v198
    %270 = vmatmul.bf16.gmra.mxu0 %v59
    %v271 = vpop.f32.mrf.mxu0
    %v272 = vadd.f32 %v94, %v271
    %v273 = vpop.f32.mrf.mxu0
    %274 = vdwg.mxu0
    %275 = vmatpush.bf16.msra.mxu0 %v227
    %276 = vmatpush.bf16.msra.mxu0 %v223
    %277 = vmatpush.bf16.msra.mxu0 %v219
    %278 = vmatpush.bf16.msra.mxu0 %v215
    %279 = vmatpush.bf16.msra.mxu0 %v211
    %280 = vmatpush.bf16.msra.mxu0 %v207
    %281 = vmatpush.bf16.msra.mxu0 %v203
    %282 = vmatpush.bf16.msra.mxu0 %v199
    %283 = vmatmul.bf16.gmra.mxu0 %v59
    %v284 = vpop.f32.mrf.mxu0
    %v285 = vadd.f32 %v95, %v284
    %v286 = vpop.f32.mrf.mxu0
    %287 = vdwg.mxu0
    %288 = vmatpush.bf16.msra.mxu0 %v228
    %289 = vmatpush.bf16.msra.mxu0 %v224
    %290 = vmatpush.bf16.msra.mxu0 %v220
    %291 = vmatpush.bf16.msra.mxu0 %v216
    %292 = vmatpush.bf16.msra.mxu0 %v212
    %293 = vmatpush.bf16.msra.mxu0 %v208
    %294 = vmatpush.bf16.msra.mxu0 %v204
    %295 = vmatpush.bf16.msra.mxu0 %v200
    %296 = vmatmul.bf16.gmra.mxu0 %v59
    %v297 = vpop.f32.mrf.mxu0
    %v298 = vadd.f32 %v96, %v297
    %v299 = vpop.f32.mrf.mxu0
    %300 = vdwg.mxu0
    %301 = vmatpush.bf16.msra.mxu0 %v229
    %302 = vmatpush.bf16.msra.mxu0 %v225
    %303 = vmatpush.bf16.msra.mxu0 %v221
    %304 = vmatpush.bf16.msra.mxu0 %v217
    %305 = vmatpush.bf16.msra.mxu0 %v213
    %306 = vmatpush.bf16.msra.mxu0 %v209
    %307 = vmatpush.bf16.msra.mxu0 %v205
    %308 = vmatpush.bf16.msra.mxu0 %v201
    %309 = vmatmul.bf16.gmra.mxu0 %v59
    %v310 = vpop.f32.mrf.mxu0
    %v311 = vadd.f32 %v97, %v310
    %v312 = vpop.f32.mrf.mxu0
    %313 = vdwg.mxu0
    %v314 = vmax.f32 %v272, 0.0
    %v315 = vmax.f32 %v285, 0.0
    %v316 = vmax.f32 %v298, 0.0
    %v317 = vmax.f32 %v311, 0.0
    %v318 = vpack.c.bf16 %v314, %v314
    %v319 = vpack.c.bf16 %v315, %v315
    %v320 = vpack.c.bf16 %v316, %v316
    %v321 = vpack.c.bf16 %v317, %v317
    %v322 = vld [vmem:[#allocation5] sm:$0xff]
    %v323 = vld [vmem:[#allocation5 + $0x8] sm:$0xff]
    %v324 = vld [vmem:[#allocation5 + $0x10] sm:$0xff]
    %v325 = vld [vmem:[#allocation5 + $0x18] sm:$0xff]
    %v326 = vld [vmem:[#allocation5 + $0x20] sm:$0xff]
    %v327 = vld [vmem:[#allocation5 + $0x28] sm:$0xff]
    %v328 = vld [vmem:[#allocation5 + $0x30] sm:$0xff]
    %v329 = vld [vmem:[#allocation5 + $0x38] sm:$0xff]
    %v330 = vld [vmem:[#allocation5 + $0x40] sm:$0xff]
    %v331 = vld [vmem:[#allocation5 + $0x48] sm:$0xff]
    %v332 = vld [vmem:[#allocation5 + $0x50] sm:$0xff]
    %v333 = vld [vmem:[#allocation5 + $0x58] sm:$0xff]
    %v334 = vld [vmem:[#allocation5 + $0x60] sm:$0xff]
    %v335 = vld [vmem:[#allocation5 + $0x68] sm:$0xff]
    %v336 = vld [vmem:[#allocation5 + $0x70] sm:$0xff]
    %v337 = vld [vmem:[#allocation5 + $0x78] sm:$0xff]
    %v338 = vld [vmem:[#allocation5 + $0x80] sm:$0xff]
    %v339 = vld [vmem:[#allocation5 + $0x88] sm:$0xff]
    %v340 = vld [vmem:[#allocation5 + $0x90] sm:$0xff]
    %v341 = vld [vmem:[#allocation5 + $0x98] sm:$0xff]
    %v342 = vld [vmem:[#allocation5 + $0xa0] sm:$0xff]
    %v343 = vld [vmem:[#allocation5 + $0xa8] sm:$0xff]
    %v344 = vld [vmem:[#allocation5 + $0xb0] sm:$0xff]
    %v345 = vld [vmem:[#allocation5 + $0xb8] sm:$0xff]
    %v346 = vld [vmem:[#allocation5 + $0xc0] sm:$0xff]
    %v347 = vld [vmem:[#allocation5 + $0xc8] sm:$0xff]
    %v348 = vld [vmem:[#allocation5 + $0xd0] sm:$0xff]
    %v349 = vld [vmem:[#allocation5 + $0xd8] sm:$0xff]
    %v350 = vld [vmem:[#allocation5 + $0xe0] sm:$0xff]
    %v351 = vld [vmem:[#allocation5 + $0xe8] sm:$0xff]
    %v352 = vld [vmem:[#allocation5 + $0xf0] sm:$0xff]
    %v353 = vld [vmem:[#allocation5 + $0xf8] sm:$0xff]
    %v354 = vld [vmem:[#allocation5 + $0x100] sm:$0xff]
    %v355 = vld [vmem:[#allocation5 + $0x108] sm:$0xff]
    %v356 = vld [vmem:[#allocation5 + $0x110] sm:$0xff]
    %v357 = vld [vmem:[#allocation5 + $0x118] sm:$0xff]
    %v358 = vld [vmem:[#allocation5 + $0x120] sm:$0xff]
    %v359 = vld [vmem:[#allocation5 + $0x128] sm:$0xff]
    %v360 = vld [vmem:[#allocation5 + $0x130] sm:$0xff]
    %v361 = vld [vmem:[#allocation5 + $0x138] sm:$0xff]
    %v362 = vld [vmem:[#allocation5 + $0x140] sm:$0xff]
    %v363 = vld [vmem:[#allocation5 + $0x148] sm:$0xff]
    %v364 = vld [vmem:[#allocation5 + $0x150] sm:$0xff]
    %v365 = vld [vmem:[#allocation5 + $0x158] sm:$0xff]
    %v366 = vld [vmem:[#allocation5 + $0x160] sm:$0xff]
    %v367 = vld [vmem:[#allocation5 + $0x168] sm:$0xff]
    %v368 = vld [vmem:[#allocation5 + $0x170] sm:$0xff]
    %v369 = vld [vmem:[#allocation5 + $0x178] sm:$0xff]
    %v370 = vld [vmem:[#allocation5 + $0x180] sm:$0xff]
    %v371 = vld [vmem:[#allocation5 + $0x188] sm:$0xff]
    %v372 = vld [vmem:[#allocation5 + $0x190] sm:$0xff]
    %v373 = vld [vmem:[#allocation5 + $0x198] sm:$0xff]
    %v374 = vld [vmem:[#allocation5 + $0x1a0] sm:$0xff]
    %v375 = vld [vmem:[#allocation5 + $0x1a8] sm:$0xff]
    %v376 = vld [vmem:[#allocation5 + $0x1b0] sm:$0xff]
    %v377 = vld [vmem:[#allocation5 + $0x1b8] sm:$0xff]
    %v378 = vld [vmem:[#allocation5 + $0x1c0] sm:$0xff]
    %v379 = vld [vmem:[#allocation5 + $0x1c8] sm:$0xff]
    %v380 = vld [vmem:[#allocation5 + $0x1d0] sm:$0xff]
    %v381 = vld [vmem:[#allocation5 + $0x1d8] sm:$0xff]
    %v382 = vld [vmem:[#allocation5 + $0x1e0] sm:$0xff]
    %v383 = vld [vmem:[#allocation5 + $0x1e8] sm:$0xff]
    %v384 = vld [vmem:[#allocation5 + $0x1f0] sm:$0xff]
    %v385 = vld [vmem:[#allocation5 + $0x1f8] sm:$0xff]
    %v386 = vld [vmem:[%s4] sm:$0x3]
    %v388 = vperm.slane %v386, 0
    %v389 = vperm.slane %v386, 1
    %v456 = vunpack.c.l.b16 %v322
    %v457 = vunpack.c.h.b16 %v322
    %v458 = vunpack.c.l.b16 %v323
    %v459 = vunpack.c.h.b16 %v323
    %v460 = vunpack.c.l.b16 %v324
    %v461 = vunpack.c.h.b16 %v324
    %v462 = vunpack.c.l.b16 %v325
    %v463 = vunpack.c.h.b16 %v325
    %v464 = vunpack.c.l.b16 %v326
    %v465 = vunpack.c.h.b16 %v326
    %v466 = vunpack.c.l.b16 %v327
    %v467 = vunpack.c.h.b16 %v327
    %v468 = vunpack.c.l.b16 %v328
    %v469 = vunpack.c.h.b16 %v328
    %v470 = vunpack.c.l.b16 %v329
    %v471 = vunpack.c.h.b16 %v329
    %v472 = vunpack.c.l.b16 %v330
    %v473 = vunpack.c.h.b16 %v330
    %v474 = vunpack.c.l.b16 %v331
    %v475 = vunpack.c.h.b16 %v331
    %v476 = vunpack.c.l.b16 %v332
    %v477 = vunpack.c.h.b16 %v332
    %v478 = vunpack.c.l.b16 %v333
    %v479 = vunpack.c.h.b16 %v333
    %v480 = vunpack.c.l.b16 %v334
    %v481 = vunpack.c.h.b16 %v334
    %v482 = vunpack.c.l.b16 %v335
    %v483 = vunpack.c.h.b16 %v335
    %v484 = vunpack.c.l.b16 %v336
    %v485 = vunpack.c.h.b16 %v336
    %v486 = vunpack.c.l.b16 %v337
    %v487 = vunpack.c.h.b16 %v337
    %v488 = vunpack.c.l.b16 %v338
    %v489 = vunpack.c.h.b16 %v338
    %v490 = vunpack.c.l.b16 %v339
    %v491 = vunpack.c.h.b16 %v339
    %v492 = vunpack.c.l.b16 %v340
    %v493 = vunpack.c.h.b16 %v340
    %v494 = vunpack.c.l.b16 %v341
    %v495 = vunpack.c.h.b16 %v341
    %v496 = vunpack.c.l.b16 %v342
    %v497 = vunpack.c.h.b16 %v342
    %v498 = vunpack.c.l.b16 %v343
    %v499 = vunpack.c.h.b16 %v343
    %v500 = vunpack.c.l.b16 %v344
    %v501 = vunpack.c.h.b16 %v344
    %v502 = vunpack.c.l.b16 %v345
    %v503 = vunpack.c.h.b16 %v345
    %v504 = vunpack.c.l.b16 %v346
    %v505 = vunpack.c.h.b16 %v346
    %v506 = vunpack.c.l.b16 %v347
    %v507 = vunpack.c.h.b16 %v347
    %v508 = vunpack.c.l.b16 %v348
    %v509 = vunpack.c.h.b16 %v348
    %v510 = vunpack.c.l.b16 %v349
    %v511 = vunpack.c.h.b16 %v349
    %v512 = vunpack.c.l.b16 %v350
    %v513 = vunpack.c.h.b16 %v350
    %v514 = vunpack.c.l.b16 %v351
    %v515 = vunpack.c.h.b16 %v351
    %v516 = vunpack.c.l.b16 %v352
    %v517 = vunpack.c.h.b16 %v352
    %v518 = vunpack.c.l.b16 %v353
    %v519 = vunpack.c.h.b16 %v353
    %v520 = vunpack.c.l.b16 %v354
    %v521 = vunpack.c.h.b16 %v354
    %v522 = vunpack.c.l.b16 %v355
    %v523 = vunpack.c.h.b16 %v355
    %v524 = vunpack.c.l.b16 %v356
    %v525 = vunpack.c.h.b16 %v356
    %v526 = vunpack.c.l.b16 %v357
    %v527 = vunpack.c.h.b16 %v357
    %v528 = vunpack.c.l.b16 %v358
    %v529 = vunpack.c.h.b16 %v358
    %v530 = vunpack.c.l.b16 %v359
    %v531 = vunpack.c.h.b16 %v359
    %v532 = vunpack.c.l.b16 %v360
    %v533 = vunpack.c.h.b16 %v360
    %v534 = vunpack.c.l.b16 %v361
    %v535 = vunpack.c.h.b16 %v361
    %v536 = vunpack.c.l.b16 %v362
    %v537 = vunpack.c.h.b16 %v362
    %v538 = vunpack.c.l.b16 %v363
    %v539 = vunpack.c.h.b16 %v363
    %v540 = vunpack.c.l.b16 %v364
    %v541 = vunpack.c.h.b16 %v364
    %v542 = vunpack.c.l.b16 %v365
    %v543 = vunpack.c.h.b16 %v365
    %v544 = vunpack.c.l.b16 %v366
    %v545 = vunpack.c.h.b16 %v366
    %v546 = vunpack.c.l.b16 %v367
    %v547 = vunpack.c.h.b16 %v367
    %v548 = vunpack.c.l.b16 %v368
    %v549 = vunpack.c.h.b16 %v368
    %v550 = vunpack.c.l.b16 %v369
    %v551 = vunpack.c.h.b16 %v369
    %v552 = vunpack.c.l.b16 %v370
    %v553 = vunpack.c.h.b16 %v370
    %v554 = vunpack.c.l.b16 %v371
    %v555 = vunpack.c.h.b16 %v371
    %v556 = vunpack.c.l.b16 %v372
    %v557 = vunpack.c.h.b16 %v372
    %v558 = vunpack.c.l.b16 %v373
    %v559 = vunpack.c.h.b16 %v373
    %v560 = vunpack.c.l.b16 %v374
    %v561 = vunpack.c.h.b16 %v374
    %v562 = vunpack.c.l.b16 %v375
    %v563 = vunpack.c.h.b16 %v375
    %v564 = vunpack.c.l.b16 %v376
    %v565 = vunpack.c.h.b16 %v376
    %v566 = vunpack.c.l.b16 %v377
    %v567 = vunpack.c.h.b16 %v377
    %v568 = vunpack.c.l.b16 %v378
    %v569 = vunpack.c.h.b16 %v378
    %v570 = vunpack.c.l.b16 %v379
    %v571 = vunpack.c.h.b16 %v379
    %v572 = vunpack.c.l.b16 %v380
    %v573 = vunpack.c.h.b16 %v380
    %v574 = vunpack.c.l.b16 %v381
    %v575 = vunpack.c.h.b16 %v381
    %v576 = vunpack.c.l.b16 %v382
    %v577 = vunpack.c.h.b16 %v382
    %v578 = vunpack.c.l.b16 %v383
    %v579 = vunpack.c.h.b16 %v383
    %v580 = vunpack.c.l.b16 %v384
    %v581 = vunpack.c.h.b16 %v384
    %v582 = vunpack.c.l.b16 %v385
    %v583 = vunpack.c.h.b16 %v385
    %v584 = vpack.c.b16 %v458, %v456
    %v585 = vpack.c.b16 %v459, %v457
    %v586 = vpack.c.b16 %v462, %v460
    %v587 = vpack.c.b16 %v463, %v461
    %v588 = vpack.c.b16 %v466, %v464
    %v589 = vpack.c.b16 %v467, %v465
    %v590 = vpack.c.b16 %v470, %v468
    %v591 = vpack.c.b16 %v471, %v469
    %v592 = vpack.c.b16 %v474, %v472
    %v593 = vpack.c.b16 %v475, %v473
    %v594 = vpack.c.b16 %v478, %v476
    %v595 = vpack.c.b16 %v479, %v477
    %v596 = vpack.c.b16 %v482, %v480
    %v597 = vpack.c.b16 %v483, %v481
    %v598 = vpack.c.b16 %v486, %v484
    %v599 = vpack.c.b16 %v487, %v485
    %v600 = vpack.c.b16 %v490, %v488
    %v601 = vpack.c.b16 %v491, %v489
    %v602 = vpack.c.b16 %v494, %v492
    %v603 = vpack.c.b16 %v495, %v493
    %v604 = vpack.c.b16 %v498, %v496
    %v605 = vpack.c.b16 %v499, %v497
    %v606 = vpack.c.b16 %v502, %v500
    %v607 = vpack.c.b16 %v503, %v501
    %v608 = vpack.c.b16 %v506, %v504
    %v609 = vpack.c.b16 %v507, %v505
    %v610 = vpack.c.b16 %v510, %v508
    %v611 = vpack.c.b16 %v511, %v509
    %v612 = vpack.c.b16 %v514, %v512
    %v613 = vpack.c.b16 %v515, %v513
    %v614 = vpack.c.b16 %v518, %v516
    %v615 = vpack.c.b16 %v519, %v517
    %v616 = vpack.c.b16 %v522, %v520
    %v617 = vpack.c.b16 %v523, %v521
    %v618 = vpack.c.b16 %v526, %v524
    %v619 = vpack.c.b16 %v527, %v525
    %v620 = vpack.c.b16 %v530, %v528
    %v621 = vpack.c.b16 %v531, %v529
    %v622 = vpack.c.b16 %v534, %v532
    %v623 = vpack.c.b16 %v535, %v533
    %v624 = vpack.c.b16 %v538, %v536
    %v625 = vpack.c.b16 %v539, %v537
    %v626 = vpack.c.b16 %v542, %v540
    %v627 = vpack.c.b16 %v543, %v541
    %v628 = vpack.c.b16 %v546, %v544
    %v629 = vpack.c.b16 %v547, %v545
    %v630 = vpack.c.b16 %v550, %v548
    %v631 = vpack.c.b16 %v551, %v549
    %v632 = vpack.c.b16 %v554, %v552
    %v633 = vpack.c.b16 %v555, %v553
    %v634 = vpack.c.b16 %v558, %v556
    %v635 = vpack.c.b16 %v559, %v557
    %v636 = vpack.c.b16 %v562, %v560
    %v637 = vpack.c.b16 %v563, %v561
    %v638 = vpack.c.b16 %v566, %v564
    %v639 = vpack.c.b16 %v567, %v565
    %v640 = vpack.c.b16 %v570, %v568
    %v641 = vpack.c.b16 %v571, %v569
    %v642 = vpack.c.b16 %v574, %v572
    %v643 = vpack.c.b16 %v575, %v573
    %v644 = vpack.c.b16 %v578, %v576
    %v645 = vpack.c.b16 %v579, %v577
    %v646 = vpack.c.b16 %v582, %v580
    %v647 = vpack.c.b16 %v583, %v581
    %712 = vmatpush.bf16.msra.mxu0 %v598
    %713 = vmatpush.bf16.msra.mxu0 %v596
    %714 = vmatpush.bf16.msra.mxu0 %v594
    %715 = vmatpush.bf16.msra.mxu0 %v592
    %716 = vmatpush.bf16.msra.mxu0 %v590
    %717 = vmatpush.bf16.msra.mxu0 %v588
    %718 = vmatpush.bf16.msra.mxu0 %v586
    %719 = vmatpush.bf16.msra.mxu0 %v584
    %720 = vmatmul.bf16.gmra.mxu0 %v318
    %v721 = vpop.f32.mrf.mxu0
    %v722 = vadd.f32 %v388, %v721
    %v723 = vpop.f32.mrf.mxu0
    %724 = vdwg.mxu0
    %725 = vmatpush.bf16.msra.mxu0 %v614
    %726 = vmatpush.bf16.msra.mxu0 %v612
    %727 = vmatpush.bf16.msra.mxu0 %v610
    %728 = vmatpush.bf16.msra.mxu0 %v608
    %729 = vmatpush.bf16.msra.mxu0 %v606
    %730 = vmatpush.bf16.msra.mxu0 %v604
    %731 = vmatpush.bf16.msra.mxu0 %v602
    %732 = vmatpush.bf16.msra.mxu0 %v600
    %733 = vmatmul.bf16.gmra.mxu0 %v319
    %v734 = vpop.f32.mrf.mxu0
    %v735 = vadd.f32 %v722, %v734
    %v736 = vpop.f32.mrf.mxu0
    %737 = vdwg.mxu0
    %738 = vmatpush.bf16.msra.mxu0 %v630
    %739 = vmatpush.bf16.msra.mxu0 %v628
    %740 = vmatpush.bf16.msra.mxu0 %v626
    %741 = vmatpush.bf16.msra.mxu0 %v624
    %742 = vmatpush.bf16.msra.mxu0 %v622
    %743 = vmatpush.bf16.msra.mxu0 %v620
    %744 = vmatpush.bf16.msra.mxu0 %v618
    %745 = vmatpush.bf16.msra.mxu0 %v616
    %746 = vmatmul.bf16.gmra.mxu0 %v320
    %v747 = vpop.f32.mrf.mxu0
    %v748 = vadd.f32 %v735, %v747
    %v749 = vpop.f32.mrf.mxu0
    %750 = vdwg.mxu0
    %751 = vmatpush.bf16.msra.mxu0 %v646
    %752 = vmatpush.bf16.msra.mxu0 %v644
    %753 = vmatpush.bf16.msra.mxu0 %v642
    %754 = vmatpush.bf16.msra.mxu0 %v640
    %755 = vmatpush.bf16.msra.mxu0 %v638
    %756 = vmatpush.bf16.msra.mxu0 %v636
    %757 = vmatpush.bf16.msra.mxu0 %v634
    %758 = vmatpush.bf16.msra.mxu0 %v632
    %759 = vmatmul.bf16.gmra.mxu0 %v321
    %v760 = vpop.f32.mrf.mxu0
    %v761 = vadd.f32 %v748, %v760
    %v762 = vpop.f32.mrf.mxu0
    %763 = vdwg.mxu0
    %764 = vmatpush.bf16.msra.mxu0 %v599
    %765 = vmatpush.bf16.msra.mxu0 %v597
    %766 = vmatpush.bf16.msra.mxu0 %v595
    %767 = vmatpush.bf16.msra.mxu0 %v593
    %768 = vmatpush.bf16.msra.mxu0 %v591
    %769 = vmatpush.bf16.msra.mxu0 %v589
    %770 = vmatpush.bf16.msra.mxu0 %v587
    %771 = vmatpush.bf16.msra.mxu0 %v585
    %772 = vmatmul.bf16.gmra.mxu0 %v318
    %v773 = vpop.f32.mrf.mxu0
    %v774 = vadd.f32 %v389, %v773
    %v775 = vpop.f32.mrf.mxu0
    %776 = vdwg.mxu0
    %777 = vmatpush.bf16.msra.mxu0 %v615
    %778 = vmatpush.bf16.msra.mxu0 %v613
    %779 = vmatpush.bf16.msra.mxu0 %v611
    %780 = vmatpush.bf16.msra.mxu0 %v609
    %781 = vmatpush.bf16.msra.mxu0 %v607
    %782 = vmatpush.bf16.msra.mxu0 %v605
    %783 = vmatpush.bf16.msra.mxu0 %v603
    %784 = vmatpush.bf16.msra.mxu0 %v601
    %785 = vmatmul.bf16.gmra.mxu0 %v319
    %v786 = vpop.f32.mrf.mxu0
    %v787 = vadd.f32 %v774, %v786
    %v788 = vpop.f32.mrf.mxu0
    %789 = vdwg.mxu0
    %790 = vmatpush.bf16.msra.mxu0 %v631
    %791 = vmatpush.bf16.msra.mxu0 %v629
    %792 = vmatpush.bf16.msra.mxu0 %v627
    %793 = vmatpush.bf16.msra.mxu0 %v625
    %794 = vmatpush.bf16.msra.mxu0 %v623
    %795 = vmatpush.bf16.msra.mxu0 %v621
    %796 = vmatpush.bf16.msra.mxu0 %v619
    %797 = vmatpush.bf16.msra.mxu0 %v617
    %798 = vmatmul.bf16.gmra.mxu0 %v320
    %v799 = vpop.f32.mrf.mxu0
    %v800 = vadd.f32 %v787, %v799
    %v801 = vpop.f32.mrf.mxu0
    %802 = vdwg.mxu0
    %803 = vmatpush.bf16.msra.mxu0 %v647
    %804 = vmatpush.bf16.msra.mxu0 %v645
    %805 = vmatpush.bf16.msra.mxu0 %v643
    %806 = vmatpush.bf16.msra.mxu0 %v641
    %807 = vmatpush.bf16.msra.mxu0 %v639
    %808 = vmatpush.bf16.msra.mxu0 %v637
    %809 = vmatpush.bf16.msra.mxu0 %v635
    %810 = vmatpush.bf16.msra.mxu0 %v633
    %811 = vmatmul.bf16.gmra.mxu0 %v321
    %v812 = vpop.f32.mrf.mxu0
    %v813 = vadd.f32 %v800, %v812
    %v814 = vpop.f32.mrf.mxu0
    %815 = vdwg.mxu0
    %v816 = vmax.f32 %v761, 0.0
    %v817 = vmax.f32 %v813, 0.0
    %v818 = vpack.c.bf16 %v816, %v816
    %v819 = vpack.c.bf16 %v817, %v817
    %v820 = vld [vmem:[%s5] sm:$0xf]
    %v821 = vld [vmem:[%s5 + $0x4] sm:$0xf]
    %v822 = vld [vmem:[%s5 + $0x8] sm:$0xf]
    %v823 = vld [vmem:[%s5 + $0xc] sm:$0xf]
    %v824 = vld [vmem:[%s5 + $0x10] sm:$0xf]
    %v825 = vld [vmem:[%s5 + $0x14] sm:$0xf]
    %v826 = vld [vmem:[%s5 + $0x18] sm:$0xf]
    %v827 = vld [vmem:[%s5 + $0x1c] sm:$0xf]
    %v828 = vld [vmem:[%s5 + $0x20] sm:$0xf]
    %v829 = vld [vmem:[%s5 + $0x24] sm:$0xf]
    %v830 = vld [vmem:[%s5 + $0x28] sm:$0xf]
    %v831 = vld [vmem:[%s5 + $0x2c] sm:$0xf]
    %v832 = vld [vmem:[%s5 + $0x30] sm:$0xf]
    %v833 = vld [vmem:[%s5 + $0x34] sm:$0xf]
    %v834 = vld [vmem:[%s5 + $0x38] sm:$0xf]
    %v835 = vld [vmem:[%s5 + $0x3c] sm:$0xf]
    %v836 = vld [vmem:[%s5 + $0x40] sm:$0xf]
    %v837 = vld [vmem:[%s5 + $0x44] sm:$0xf]
    %v838 = vld [vmem:[%s5 + $0x48] sm:$0xf]
    %v839 = vld [vmem:[%s5 + $0x4c] sm:$0xf]
    %v840 = vld [vmem:[%s5 + $0x50] sm:$0xf]
    %v841 = vld [vmem:[%s5 + $0x54] sm:$0xf]
    %v842 = vld [vmem:[%s5 + $0x58] sm:$0xf]
    %v843 = vld [vmem:[%s5 + $0x5c] sm:$0xf]
    %v844 = vld [vmem:[%s5 + $0x60] sm:$0xf]
    %v845 = vld [vmem:[%s5 + $0x64] sm:$0xf]
    %v846 = vld [vmem:[%s5 + $0x68] sm:$0xf]
    %v847 = vld [vmem:[%s5 + $0x6c] sm:$0xf]
    %v848 = vld [vmem:[%s5 + $0x70] sm:$0xf]
    %v849 = vld [vmem:[%s5 + $0x74] sm:$0xf]
    %v850 = vld [vmem:[%s5 + $0x78] sm:$0xf]
    %v851 = vld [vmem:[%s5 + $0x7c] sm:$0xf]
    %v852 = vld [vmem:[%s6] sm:$0x1]
    %v854 = vperm.slane %v852, 0
    %v888 = vunpack.c.l.b16 %v820
    %v889 = vunpack.c.l.b16 %v821
    %v890 = vunpack.c.l.b16 %v822
    %v891 = vunpack.c.l.b16 %v823
    %v892 = vunpack.c.l.b16 %v824
    %v893 = vunpack.c.l.b16 %v825
    %v894 = vunpack.c.l.b16 %v826
    %v895 = vunpack.c.l.b16 %v827
    %v896 = vunpack.c.l.b16 %v828
    %v897 = vunpack.c.l.b16 %v829
    %v898 = vunpack.c.l.b16 %v830
    %v899 = vunpack.c.l.b16 %v831
    %v900 = vunpack.c.l.b16 %v832
    %v901 = vunpack.c.l.b16 %v833
    %v902 = vunpack.c.l.b16 %v834
    %v903 = vunpack.c.l.b16 %v835
    %v904 = vunpack.c.l.b16 %v836
    %v905 = vunpack.c.l.b16 %v837
    %v906 = vunpack.c.l.b16 %v838
    %v907 = vunpack.c.l.b16 %v839
    %v908 = vunpack.c.l.b16 %v840
    %v909 = vunpack.c.l.b16 %v841
    %v910 = vunpack.c.l.b16 %v842
    %v911 = vunpack.c.l.b16 %v843
    %v912 = vunpack.c.l.b16 %v844
    %v913 = vunpack.c.l.b16 %v845
    %v914 = vunpack.c.l.b16 %v846
    %v915 = vunpack.c.l.b16 %v847
    %v916 = vunpack.c.l.b16 %v848
    %v917 = vunpack.c.l.b16 %v849
    %v918 = vunpack.c.l.b16 %v850
    %v919 = vunpack.c.l.b16 %v851
    %v920 = vpack.c.b16 %v889, %v888
    %v921 = vpack.c.b16 %v891, %v890
    %v922 = vpack.c.b16 %v893, %v892
    %v923 = vpack.c.b16 %v895, %v894
    %v924 = vpack.c.b16 %v897, %v896
    %v925 = vpack.c.b16 %v899, %v898
    %v926 = vpack.c.b16 %v901, %v900
    %v927 = vpack.c.b16 %v903, %v902
    %v928 = vpack.c.b16 %v905, %v904
    %v929 = vpack.c.b16 %v907, %v906
    %v930 = vpack.c.b16 %v909, %v908
    %v931 = vpack.c.b16 %v911, %v910
    %v932 = vpack.c.b16 %v913, %v912
    %v933 = vpack.c.b16 %v915, %v914
    %v934 = vpack.c.b16 %v917, %v916
    %v935 = vpack.c.b16 %v919, %v918
    %952 = vmatpush.bf16.msra.mxu0 %v927
    %953 = vmatpush.bf16.msra.mxu0 %v926
    %954 = vmatpush.bf16.msra.mxu0 %v925
    %955 = vmatpush.bf16.msra.mxu0 %v924
    %956 = vmatpush.bf16.msra.mxu0 %v923
    %957 = vmatpush.bf16.msra.mxu0 %v922
    %958 = vmatpush.bf16.msra.mxu0 %v921
    %959 = vmatpush.bf16.msra.mxu0 %v920
    %960 = vmatmul.bf16.gmra.mxu0 %v818
    %v961 = vpop.f32.mrf.mxu0
    %v962 = vadd.f32 %v854, %v961
    %v963 = vpop.f32.mrf.mxu0
    %964 = vdwg.mxu0
    %965 = vmatpush.bf16.msra.mxu0 %v935
    %966 = vmatpush.bf16.msra.mxu0 %v934
    %967 = vmatpush.bf16.msra.mxu0 %v933
    %968 = vmatpush.bf16.msra.mxu0 %v932
    %969 = vmatpush.bf16.msra.mxu0 %v931
    %970 = vmatpush.bf16.msra.mxu0 %v930
    %971 = vmatpush.bf16.msra.mxu0 %v929
    %972 = vmatpush.bf16.msra.mxu0 %v928
    %973 = vmatmul.bf16.gmra.mxu0 %v819
    %v974 = vpop.f32.mrf.mxu0
    %v975 = vadd.f32 %v962, %v974
    %v976 = vpop.f32.mrf.mxu0
    %977 = vdwg.mxu0
    %vm978 = vcmask 113664
    %979 = vst.msk [vmem:[#allocation7] sm:$0xff] %vm978, %v975
    // Predicated region
    $region38: #{tpu_custom_call.1} parent=1 // pred_check
      _
    $region39: #{tpu_custom_call.1} parent=1 // pred_check_branch
      %981 = sbr.rel (0) target = $region41
    $region40: #{tpu_custom_call.1} parent=1 // pred_region
      %983 = vsyncadd [#allocation4], 0
      %s985 = sshll.u32 [#allocation7], 4
      %s986 = int_to_ptr.vmem [resolvable:$true] %s985
      %s987 = sshll.u32 %s7, 4
      %s988 = int_to_ptr.hbm [resolvable:$true] %s987
      %990 = dma.vmem_to_hbm [thread:$0]  %s986, 128, %s988, [#allocation4]
    $region41: #{tpu_custom_call.1} parent=1 // pred_fallthru
      _
    // Predicated region
    $region42: #{tpu_custom_call.1} parent=1 // pred_check
      _
    $region43: #{tpu_custom_call.1} parent=1 // pred_check_branch
      %992 = sbr.rel (0) target = $region45
    $region44: #{tpu_custom_call.1} parent=1 // pred_region
      %994 = dma.done [#allocation4], 128
    $region45: #{tpu_custom_call.1} parent=1 // pred_fallthru
      _
    %995 = vsyncpa [#allocation3], 1
    %996 = vsyncpa [#allocation6], 1
    %997 = vsyncpa [#allocation4], 1

</llo_original>
